<compile_context>
chip_gen: v7x
topology: tpu7x:2x2x1
jax: 0.10.0
libtpu: 0.0.40
codegen_flags: <defaults>
</compile_context>

<pallas_src>
import functools

import jax
import jax.numpy as jnp
from jax import lax
from jax.experimental import pallas as pl
from jax.experimental.pallas import tpu as pltpu


# --------------------------------------------------------------------------
# Kernel
# --------------------------------------------------------------------------
def _spp_kernel(e_ref, x_ref, o_ref, *, H, W):
    """e_ref: (4, H*W) edge sentinels [w_hi, w_lo, h_hi, h_lo]
       x_ref: (C_blk, H*W)
       o_ref: (4, C_blk, H*W) = [x, pool5, pool9, pool13]."""
    HW = H * W
    x = x_ref[...]
    e = e_ref[...]
    w_hi, w_lo, h_hi, h_lo = e[0:1], e[1:2], e[2:3], e[3:4]

    def shifted(v, amt, edge):
        # out[..., i] = v[..., i + amt] where the neighbour is inside the
        # image; -inf (sentinel) otherwise.  pltpu.roll matches jnp.roll
        # semantics (out[i] = in[i - shift]) and needs a non-negative axis.
        rolled = pltpu.roll(v, shift=(-amt) % HW, axis=v.ndim - 1)
        return jnp.minimum(rolled, edge)

    def slide5(v, step, hi, lo):
        # 1-D sliding max, window 5, stride 1, -inf padding, along stride
        # `step` of the flattened H*W axis (step=1 -> W axis, step=W -> H).
        # Log-shift form: a = 3-window max; max(a[i-1], a[i+1]) = 5-window.
        a = jnp.maximum(v, jnp.maximum(shifted(v, step, hi),
                                       shifted(v, -step, lo)))
        return jnp.maximum(shifted(a, step, hi), shifted(a, -step, lo))

    def pool5(v):  # separable 5x5 max pool, stride 1, "same", -inf padding
        return slide5(slide5(v, 1, w_hi, w_lo), W, h_hi, h_lo)

    p1 = pool5(x)    # == MaxPool2d(k=5,  p=2)
    p2 = pool5(p1)   # == MaxPool2d(k=9,  p=4)
    p3 = pool5(p2)   # == MaxPool2d(k=13, p=6)

    o_ref[0] = x
    o_ref[1] = p1
    o_ref[2] = p2
    o_ref[3] = p3


# --------------------------------------------------------------------------
# Host-side helpers
# --------------------------------------------------------------------------
def _vmem_capacity_bytes():
    """Best-effort query of per-core VMEM; fall back to the smallest
    generation (v7x, 64 MiB) so derived tiles are safe everywhere."""
    try:
        return int(pltpu.get_tpu_info().vmem_capacity_bytes)
    except Exception:
        return 64 * 1024 * 1024


def _edge_sentinels(H, W, dtype):
    """(4, H*W) rows [w_hi, w_lo, h_hi, h_lo]: +MAX where the +-1 / +-W
    neighbour is inside the image, -MAX (i.e. the pooling pad value) where
    the rolled neighbour wraps outside the image."""
    HW = H * W
    pos = jnp.arange(HW, dtype=jnp.int32)
    col = pos % W
    row = pos // W
    if jnp.issubdtype(jnp.dtype(dtype), jnp.floating):
        hi_v, lo_v = jnp.inf, -jnp.inf
    else:  # integer max-pool: pad with the dtype minimum
        info = jnp.iinfo(dtype)
        hi_v, lo_v = info.max, info.min

    def sel(mask):
        return jnp.where(mask, hi_v, lo_v).astype(dtype)

    return jnp.stack([sel(col < (W - 1)),   # neighbour at +1 in-row
                      sel(col >= 1),        # neighbour at -1 in-row
                      sel(row < (H - 1)),   # neighbour row at +1 exists
                      sel(row >= 1)],       # neighbour row at -1 exists
                     axis=0)


def _tiling(N, C, HW, itemsize):
    """Choose channels-per-step and the VMEM scoped limit.

    Each grid step moves ~5x the input tile over HBM, so amortizing the
    ~0.35 us/step pipeline overhead wants multi-MiB input tiles; but the
    footprint (2 pipeline buffers x 5 slabs + Mosaic roll/max temporaries)
    must stay inside the generation's VMEM.
    """
    vmem = _vmem_capacity_bytes()
    big_vmem = vmem >= 96 * 1024 * 1024            # v5e / v6e: 128 MiB
    target_tile = (3 << 20) if big_vmem else (7 << 18)   # 3 MiB vs 1.75 MiB
    limit_cap = (96 << 20) if big_vmem else (44 << 20)

    # dtype-aware sublane alignment: f32 -> 8, bf16 -> 16, int8/fp8 -> 32
    align = max(8, 32 // max(1, itemsize))

    budget = max(1, target_tile // (HW * itemsize))
    cap = min(C, budget)

    def valid(bc):
        return C % bc == 0 and (bc == C or bc % align == 0)

    best = None       # largest valid tile
    chosen = None     # largest valid tile that also yields >= 4 grid programs
    for bc in range(cap, 0, -1):
        if not valid(bc):
            continue
        if best is None:
            best = bc
        if N * (C // bc) >= 4:
            chosen = bc
            break
    bc = chosen if chosen is not None else (best if best is not None else C)

    tile = bc * HW * itemsize
    # 2 buffers x (1 in + 4 out slabs) = 10 tiles, ~6 tile-sized internal
    # temporaries for the roll/min/max chain, + fixed headroom.
    need = 16 * tile + (4 << 20)
    vmem_limit = int(min(limit_cap, max(32 << 20, need)))
    return bc, vmem_limit


# --------------------------------------------------------------------------
# Public entry point
# --------------------------------------------------------------------------
def spp_block(x):
    """SPPBlock forward. x: (N, C, H, W) -> (N, 4*C, H, W)."""
    N, C, H, W = x.shape
    HW = H * W
    itemsize = jnp.dtype(x.dtype).itemsize

    xr = x.reshape(N, C, HW)                     # free, contiguous reshape
    edges = _edge_sentinels(H, W, x.dtype)       # (4, HW), constant per shape

    bc, vmem_limit = _tiling(N, C, HW, itemsize)
    grid = (N, C // bc)

    # Memory-bound kernel: ~1 read + 4 write slabs per element.
    cost = pl.CostEstimate(
        flops=42 * N * C * HW,                   # ~7 min/max per slide x 6
        transcendentals=0,
        bytes_accessed=5 * N * C * HW * itemsize + 4 * HW * itemsize,
    )

    out = pl.pallas_call(
        functools.partial(_spp_kernel, H=H, W=W),
        out_shape=jax.ShapeDtypeStruct((N, 4, C, HW), x.dtype),
        grid_spec=pltpu.PrefetchScalarGridSpec(
            num_scalar_prefetch=0,
            grid=grid,
            in_specs=[
                # Edge sentinels: constant block index -> DMA'd once.
                pl.BlockSpec((4, HW), lambda n, c: (0, 0)),
                pl.BlockSpec((None, bc, HW), lambda n, c: (n, c, 0)),
            ],
            out_specs=pl.BlockSpec((None, 4, bc, HW),
                                   lambda n, c: (n, 0, c, 0)),
        ),
        compiler_params=pltpu.CompilerParams(
            dimension_semantics=("parallel", "parallel"),
            vmem_limit_bytes=vmem_limit,
        ),
        cost_estimate=cost,
    )(edges, xr)

    # (N, 4, C, H*W) -> (N, 4*C, H, W) is a free contiguous reshape and is
    # exactly torch.cat([x, p1, p2, p3], dim=1).
    return out.reshape(N, 4 * C, H, W)


# --------------------------------------------------------------------------
# Pure-JAX reference (PyTorch-equivalent) for correctness checking
# --------------------------------------------------------------------------
def _reference_spp(x):
    def pool(v, k):
        p = (k - 1) // 2
        return lax.reduce_window(
            v, -jnp.inf, lax.max,
            window_dimensions=(1, 1, k, k),
            window_strides=(1, 1, 1, 1),
            padding=((0, 0), (0, 0), (p, p), (p, p)),
        )
    return jnp.concatenate([x, pool(x, 5), pool(x, 9), pool(x, 13)], axis=1)


if __name__ == "__main__":
    key = jax.random.PRNGKey(0)
    N, C, H, W = 2, 4, 16, 16
    x = jax.random.normal(key, (N, C, H, W), dtype=jnp.float32)

    out = jax.block_until_ready(jax.jit(spp_block)(x))
    assert out.shape == (N, 4 * C, H, W), out.shape

    ref = jax.block_until_ready(_reference_spp(x))
    assert jnp.allclose(out, ref), "mismatch vs reference"

    print("KERNEL_OK")
</pallas_src>

<mosaic_0001>
module attributes {stable_mosaic.version = 11 : i64} {
  func.func @_spp_kernel(%arg0: i32, %arg1: i32, %arg2: memref<4x256xf32, #tpu.memory_space<vmem>>, %arg3: memref<1x4x256xf32, #tpu.memory_space<vmem>>, %arg4: memref<1x4x4x256xf32, #tpu.memory_space<vmem>>) attributes {dimension_semantics = [#tpu.dimension_semantics<parallel>, #tpu.dimension_semantics<parallel>], iteration_bounds = array<i64: 2, 1>, scalar_prefetch = 0 : i64, scratch_operands = 0 : i64, tpu.core_type = #tpu.core_type<tc>, window_params = [{pipeline_mode = #tpu.pipeline_mode<synchronous>, transform_indices = @transform_0, window_bounds = array<i64: 4, 256>}, {transform_indices = @transform_1, window_bounds = array<i64: 1, 4, 256>}, {transform_indices = @transform_2, window_bounds = array<i64: 1, 4, 4, 256>}]} {
    %c0 = arith.constant 0 : index
    %c0_0 = arith.constant 0 : index
    %c0_1 = arith.constant 0 : index
    %0 = vector.load %arg3[%c0, %c0_0, %c0_1] : memref<1x4x256xf32, #tpu.memory_space<vmem>>, vector<1x4x256xf32>
    %1 = vector.shape_cast %0 : vector<1x4x256xf32> to vector<4x256xf32>
    %c0_2 = arith.constant 0 : index
    %c0_3 = arith.constant 0 : index
    %2 = vector.load %arg2[%c0_2, %c0_3] : memref<4x256xf32, #tpu.memory_space<vmem>>, vector<4x256xf32>
    %3 = vector.extract_strided_slice %2 {offsets = [0, 0], sizes = [1, 256], strides = [1, 1]} : vector<4x256xf32> to vector<1x256xf32>
    %4 = vector.extract_strided_slice %2 {offsets = [1, 0], sizes = [1, 256], strides = [1, 1]} : vector<4x256xf32> to vector<1x256xf32>
    %5 = vector.extract_strided_slice %2 {offsets = [2, 0], sizes = [1, 256], strides = [1, 1]} : vector<4x256xf32> to vector<1x256xf32>
    %6 = vector.extract_strided_slice %2 {offsets = [3, 0], sizes = [1, 256], strides = [1, 1]} : vector<4x256xf32> to vector<1x256xf32>
    %c255_i32 = arith.constant 255 : i32
    %7 = tpu.dynamic_rotate %1 by %c255_i32 dim 1 : vector<4x256xf32>, i32 -> vector<4x256xf32>
    %8 = vector.broadcast %3 : vector<1x256xf32> to vector<4x256xf32>
    %9 = arith.minimumf %7, %8 : vector<4x256xf32>
    %c1_i32 = arith.constant 1 : i32
    %10 = tpu.dynamic_rotate %1 by %c1_i32 dim 1 : vector<4x256xf32>, i32 -> vector<4x256xf32>
    %11 = vector.broadcast %4 : vector<1x256xf32> to vector<4x256xf32>
    %12 = arith.minimumf %10, %11 : vector<4x256xf32>
    %13 = arith.maximumf %9, %12 : vector<4x256xf32>
    %14 = arith.maximumf %1, %13 : vector<4x256xf32>
    %c255_i32_4 = arith.constant 255 : i32
    %15 = tpu.dynamic_rotate %14 by %c255_i32_4 dim 1 : vector<4x256xf32>, i32 -> vector<4x256xf32>
    %16 = vector.broadcast %3 : vector<1x256xf32> to vector<4x256xf32>
    %17 = arith.minimumf %15, %16 : vector<4x256xf32>
    %c1_i32_5 = arith.constant 1 : i32
    %18 = tpu.dynamic_rotate %14 by %c1_i32_5 dim 1 : vector<4x256xf32>, i32 -> vector<4x256xf32>
    %19 = vector.broadcast %4 : vector<1x256xf32> to vector<4x256xf32>
    %20 = arith.minimumf %18, %19 : vector<4x256xf32>
    %21 = arith.maximumf %17, %20 : vector<4x256xf32>
    %c240_i32 = arith.constant 240 : i32
    %22 = tpu.dynamic_rotate %21 by %c240_i32 dim 1 : vector<4x256xf32>, i32 -> vector<4x256xf32>
    %23 = vector.broadcast %5 : vector<1x256xf32> to vector<4x256xf32>
    %24 = arith.minimumf %22, %23 : vector<4x256xf32>
    %c16_i32 = arith.constant 16 : i32
    %25 = tpu.dynamic_rotate %21 by %c16_i32 dim 1 : vector<4x256xf32>, i32 -> vector<4x256xf32>
    %26 = vector.broadcast %6 : vector<1x256xf32> to vector<4x256xf32>
    %27 = arith.minimumf %25, %26 : vector<4x256xf32>
    %28 = arith.maximumf %24, %27 : vector<4x256xf32>
    %29 = arith.maximumf %21, %28 : vector<4x256xf32>
    %c240_i32_6 = arith.constant 240 : i32
    %30 = tpu.dynamic_rotate %29 by %c240_i32_6 dim 1 : vector<4x256xf32>, i32 -> vector<4x256xf32>
    %31 = vector.broadcast %5 : vector<1x256xf32> to vector<4x256xf32>
    %32 = arith.minimumf %30, %31 : vector<4x256xf32>
    %c16_i32_7 = arith.constant 16 : i32
    %33 = tpu.dynamic_rotate %29 by %c16_i32_7 dim 1 : vector<4x256xf32>, i32 -> vector<4x256xf32>
    %34 = vector.broadcast %6 : vector<1x256xf32> to vector<4x256xf32>
    %35 = arith.minimumf %33, %34 : vector<4x256xf32>
    %36 = arith.maximumf %32, %35 : vector<4x256xf32>
    %c255_i32_8 = arith.constant 255 : i32
    %37 = tpu.dynamic_rotate %36 by %c255_i32_8 dim 1 : vector<4x256xf32>, i32 -> vector<4x256xf32>
    %38 = vector.broadcast %3 : vector<1x256xf32> to vector<4x256xf32>
    %39 = arith.minimumf %37, %38 : vector<4x256xf32>
    %c1_i32_9 = arith.constant 1 : i32
    %40 = tpu.dynamic_rotate %36 by %c1_i32_9 dim 1 : vector<4x256xf32>, i32 -> vector<4x256xf32>
    %41 = vector.broadcast %4 : vector<1x256xf32> to vector<4x256xf32>
    %42 = arith.minimumf %40, %41 : vector<4x256xf32>
    %43 = arith.maximumf %39, %42 : vector<4x256xf32>
    %44 = arith.maximumf %36, %43 : vector<4x256xf32>
    %c255_i32_10 = arith.constant 255 : i32
    %45 = tpu.dynamic_rotate %44 by %c255_i32_10 dim 1 : vector<4x256xf32>, i32 -> vector<4x256xf32>
    %46 = vector.broadcast %3 : vector<1x256xf32> to vector<4x256xf32>
    %47 = arith.minimumf %45, %46 : vector<4x256xf32>
    %c1_i32_11 = arith.constant 1 : i32
    %48 = tpu.dynamic_rotate %44 by %c1_i32_11 dim 1 : vector<4x256xf32>, i32 -> vector<4x256xf32>
    %49 = vector.broadcast %4 : vector<1x256xf32> to vector<4x256xf32>
    %50 = arith.minimumf %48, %49 : vector<4x256xf32>
    %51 = arith.maximumf %47, %50 : vector<4x256xf32>
    %c240_i32_12 = arith.constant 240 : i32
    %52 = tpu.dynamic_rotate %51 by %c240_i32_12 dim 1 : vector<4x256xf32>, i32 -> vector<4x256xf32>
    %53 = vector.broadcast %5 : vector<1x256xf32> to vector<4x256xf32>
    %54 = arith.minimumf %52, %53 : vector<4x256xf32>
    %c16_i32_13 = arith.constant 16 : i32
    %55 = tpu.dynamic_rotate %51 by %c16_i32_13 dim 1 : vector<4x256xf32>, i32 -> vector<4x256xf32>
    %56 = vector.broadcast %6 : vector<1x256xf32> to vector<4x256xf32>
    %57 = arith.minimumf %55, %56 : vector<4x256xf32>
    %58 = arith.maximumf %54, %57 : vector<4x256xf32>
    %59 = arith.maximumf %51, %58 : vector<4x256xf32>
    %c240_i32_14 = arith.constant 240 : i32
    %60 = tpu.dynamic_rotate %59 by %c240_i32_14 dim 1 : vector<4x256xf32>, i32 -> vector<4x256xf32>
    %61 = vector.broadcast %5 : vector<1x256xf32> to vector<4x256xf32>
    %62 = arith.minimumf %60, %61 : vector<4x256xf32>
    %c16_i32_15 = arith.constant 16 : i32
    %63 = tpu.dynamic_rotate %59 by %c16_i32_15 dim 1 : vector<4x256xf32>, i32 -> vector<4x256xf32>
    %64 = vector.broadcast %6 : vector<1x256xf32> to vector<4x256xf32>
    %65 = arith.minimumf %63, %64 : vector<4x256xf32>
    %66 = arith.maximumf %62, %65 : vector<4x256xf32>
    %c255_i32_16 = arith.constant 255 : i32
    %67 = tpu.dynamic_rotate %66 by %c255_i32_16 dim 1 : vector<4x256xf32>, i32 -> vector<4x256xf32>
    %68 = vector.broadcast %3 : vector<1x256xf32> to vector<4x256xf32>
    %69 = arith.minimumf %67, %68 : vector<4x256xf32>
    %c1_i32_17 = arith.constant 1 : i32
    %70 = tpu.dynamic_rotate %66 by %c1_i32_17 dim 1 : vector<4x256xf32>, i32 -> vector<4x256xf32>
    %71 = vector.broadcast %4 : vector<1x256xf32> to vector<4x256xf32>
    %72 = arith.minimumf %70, %71 : vector<4x256xf32>
    %73 = arith.maximumf %69, %72 : vector<4x256xf32>
    %74 = arith.maximumf %66, %73 : vector<4x256xf32>
    %c255_i32_18 = arith.constant 255 : i32
    %75 = tpu.dynamic_rotate %74 by %c255_i32_18 dim 1 : vector<4x256xf32>, i32 -> vector<4x256xf32>
    %76 = vector.broadcast %3 : vector<1x256xf32> to vector<4x256xf32>
    %77 = arith.minimumf %75, %76 : vector<4x256xf32>
    %c1_i32_19 = arith.constant 1 : i32
    %78 = tpu.dynamic_rotate %74 by %c1_i32_19 dim 1 : vector<4x256xf32>, i32 -> vector<4x256xf32>
    %79 = vector.broadcast %4 : vector<1x256xf32> to vector<4x256xf32>
    %80 = arith.minimumf %78, %79 : vector<4x256xf32>
    %81 = arith.maximumf %77, %80 : vector<4x256xf32>
    %c240_i32_20 = arith.constant 240 : i32
    %82 = tpu.dynamic_rotate %81 by %c240_i32_20 dim 1 : vector<4x256xf32>, i32 -> vector<4x256xf32>
    %83 = vector.broadcast %5 : vector<1x256xf32> to vector<4x256xf32>
    %84 = arith.minimumf %82, %83 : vector<4x256xf32>
    %c16_i32_21 = arith.constant 16 : i32
    %85 = tpu.dynamic_rotate %81 by %c16_i32_21 dim 1 : vector<4x256xf32>, i32 -> vector<4x256xf32>
    %86 = vector.broadcast %6 : vector<1x256xf32> to vector<4x256xf32>
    %87 = arith.minimumf %85, %86 : vector<4x256xf32>
    %88 = arith.maximumf %84, %87 : vector<4x256xf32>
    %89 = arith.maximumf %81, %88 : vector<4x256xf32>
    %c240_i32_22 = arith.constant 240 : i32
    %90 = tpu.dynamic_rotate %89 by %c240_i32_22 dim 1 : vector<4x256xf32>, i32 -> vector<4x256xf32>
    %91 = vector.broadcast %5 : vector<1x256xf32> to vector<4x256xf32>
    %92 = arith.minimumf %90, %91 : vector<4x256xf32>
    %c16_i32_23 = arith.constant 16 : i32
    %93 = tpu.dynamic_rotate %89 by %c16_i32_23 dim 1 : vector<4x256xf32>, i32 -> vector<4x256xf32>
    %94 = vector.broadcast %6 : vector<1x256xf32> to vector<4x256xf32>
    %95 = arith.minimumf %93, %94 : vector<4x256xf32>
    %96 = arith.maximumf %92, %95 : vector<4x256xf32>
    %c0_24 = arith.constant 0 : index
    %c0_25 = arith.constant 0 : index
    %c0_26 = arith.constant 0 : index
    %c0_27 = arith.constant 0 : index
    %97 = vector.load %arg4[%c0_24, %c0_25, %c0_26, %c0_27] : memref<1x4x4x256xf32, #tpu.memory_space<vmem>>, vector<1x1x4x256xf32>
    %98 = vector.shape_cast %97 : vector<1x1x4x256xf32> to vector<4x256xf32>
    %99 = vector.shape_cast %1 : vector<4x256xf32> to vector<1x1x4x256xf32>
    tpu.vector_store %arg4[%c0_24, %c0_25, %c0_26, %c0_27], %99 {strides = array<i32>} : memref<1x4x4x256xf32, #tpu.memory_space<vmem>>, vector<1x1x4x256xf32>,
    %c0_28 = arith.constant 0 : index
    %c1 = arith.constant 1 : index
    %c0_29 = arith.constant 0 : index
    %c0_30 = arith.constant 0 : index
    %100 = vector.load %arg4[%c0_28, %c1, %c0_29, %c0_30] : memref<1x4x4x256xf32, #tpu.memory_space<vmem>>, vector<1x1x4x256xf32>
    %101 = vector.shape_cast %100 : vector<1x1x4x256xf32> to vector<4x256xf32>
    %102 = vector.shape_cast %36 : vector<4x256xf32> to vector<1x1x4x256xf32>
    tpu.vector_store %arg4[%c0_28, %c1, %c0_29, %c0_30], %102 {strides = array<i32>} : memref<1x4x4x256xf32, #tpu.memory_space<vmem>>, vector<1x1x4x256xf32>,
    %c0_31 = arith.constant 0 : index
    %c2 = arith.constant 2 : index
    %c0_32 = arith.constant 0 : index
    %c0_33 = arith.constant 0 : index
    %103 = vector.load %arg4[%c0_31, %c2, %c0_32, %c0_33] : memref<1x4x4x256xf32, #tpu.memory_space<vmem>>, vector<1x1x4x256xf32>
    %104 = vector.shape_cast %103 : vector<1x1x4x256xf32> to vector<4x256xf32>
    %105 = vector.shape_cast %66 : vector<4x256xf32> to vector<1x1x4x256xf32>
    tpu.vector_store %arg4[%c0_31, %c2, %c0_32, %c0_33], %105 {strides = array<i32>} : memref<1x4x4x256xf32, #tpu.memory_space<vmem>>, vector<1x1x4x256xf32>,
    %c0_34 = arith.constant 0 : index
    %c3 = arith.constant 3 : index
    %c0_35 = arith.constant 0 : index
    %c0_36 = arith.constant 0 : index
    %106 = vector.load %arg4[%c0_34, %c3, %c0_35, %c0_36] : memref<1x4x4x256xf32, #tpu.memory_space<vmem>>, vector<1x1x4x256xf32>
    %107 = vector.shape_cast %106 : vector<1x1x4x256xf32> to vector<4x256xf32>
    %108 = vector.shape_cast %96 : vector<4x256xf32> to vector<1x1x4x256xf32>
    tpu.vector_store %arg4[%c0_34, %c3, %c0_35, %c0_36], %108 {strides = array<i32>} : memref<1x4x4x256xf32, #tpu.memory_space<vmem>>, vector<1x1x4x256xf32>,
    return
  }
  func.func @transform_0(%arg0: i32, %arg1: i32) -> (i32, i32) {
    %c0_i32 = arith.constant 0 : i32
    %c0_i32_0 = arith.constant 0 : i32
    %c0_i32_1 = arith.constant 0 : i32
    return %c0_i32, %c0_i32_0 : i32, i32
  }
  func.func @transform_1(%arg0: i32, %arg1: i32) -> (i32, i32, i32) {
    %c0_i32 = arith.constant 0 : i32
    %c0_i32_0 = arith.constant 0 : i32
    return %arg0, %arg1, %c0_i32 : i32, i32, i32
  }
  func.func @transform_2(%arg0: i32, %arg1: i32) -> (i32, i32, i32, i32) {
    %c0_i32 = arith.constant 0 : i32
    %c0_i32_0 = arith.constant 0 : i32
    %c0_i32_1 = arith.constant 0 : i32
    return %arg0, %c0_i32, %arg1, %c0_i32_0 : i32, i32, i32, i32
  }
}

</mosaic_0001>

<llo_original>
// kernel: spp_block.1
$region0: #{spp_block.1}
  #allocation0 [shape = 'u32[]', space=smem, size = 0x4, offset = 0x4, fixed_abs, tag = 'smem constant byte address 0x4 - core index']
  #allocation1 [shape = 'u32[144,128]{1,0:T(1,128)}', space=vmem, size = 0x12000, scoped, tag = 'internal scratch']
  %s0 = inlined_call_operand.vmem [shape: f32[4,256], index: 0, kind: input, shape index: {}]
  %s1 = inlined_call_operand.vmem [shape: f32[2,4,256], index: 1, kind: input, shape index: {}]
  %s2 = inlined_call_operand.vmem [shape: f32[2,4,4,256], index: 2, kind: output, shape index: {}]
  %s3 = sld [smem:[#allocation0]]
  $region41: #{spp_block.1} parent=0
    _
  %s5 = ssub.s32 1, %s3
  %s6 = scalar_select 0, %s5, %s3
  loop: start=0, step=1, limit=4
  $region2: #{spp_block.1} parent=0 // loop_pre_header
    _
  $region3: #{spp_block.1} parent=0 // loop_header
    %s8 = sphi 0, %s12
    %p9 = scmp.ge.s32.totalorder %s8, 4
    %s15 = sphi 0, %s27
    %s16 = sphi 0, %s23
    %s17 = sphi 0, %s15
    %s18 = sphi 0, %s16
    %s19 = sphi 0, %s17
    %s20 = sphi 0, %s18
    %s28 = sphi 0, %s28
    %s30 = sphi 0, %s28
    %s31 = sphi 0, %s30
    %s45 = sphi 0, %s31
    %s53 = sphi 0, %s55
    %s56 = sphi 0, %s53
    %s57 = sphi 0, %s56
    %s73 = sphi 0, %s57
    %s81 = sphi 0, %s83
    %s84 = sphi 0, %s81
    %s85 = sphi 0, %s84
    %s101 = sphi 0, %s85
  $region4: #{spp_block.1} parent=0 // loop_header_branch
    %11 = sbr.rel (%p9) target = $region8
  $region5: #{spp_block.1} parent=0 // loop_body
    %s13 = ssub.s32 %s8, 1
    %s14 = ssub.s32 %s8, 2
    %s21 = sadd.s32 1, %s16
    %p22 = scmp.ge.s32.totalorder %s21, 1
    %s23 = scalar_select %p22, 0, %s21
    %s24 = sadd.s32 1, %s15
    %s25 = scalar_select %p22, %s24, %s15
    %p26 = scmp.ge.s32.totalorder %s25, 2
    %s27 = scalar_select %p26, 0, %s25
    %s29 = sadd.s32 %s28, 1
    %p32 = scmp.eq.s32.totalorder %s8, 1
    %p33 = scmp.ne.s32.totalorder %s28, %s30
    %p34 = scmp.eq.s32.totalorder %s8, 0
    %p35 = por %p33, %p34
    %p36 = scmp.ne.s32.totalorder %s28, %s30
    %p37 = scmp.eq.s32.totalorder %s13, 1
    %p38 = por %p36, %p37
    %p39 = scmp.ne.s32.totalorder %s30, %s31
    %p40 = scmp.eq.s32.totalorder %s13, 0
    %p41 = por %p39, %p40
    %p42 = scmp.ne.s32.totalorder %s30, %s31
    %p43 = scmp.eq.s32.totalorder %s14, 1
    %p44 = por %p42, %p43
    %p46 = scmp.ne.s32.totalorder %s31, %s45
    %p47 = scmp.eq.s32.totalorder %s14, 0
    %p48 = por %p46, %p47
    %s49 = ssub.s32 %s15, %s27
    %s50 = ssub.s32 %s16, %s23
    %s51 = sor.u32 %s49, %s50
    %p52 = scmp.eq.s32.totalorder %s51, 0
    %s54 = sadd.s32 %s53, 1
    %s55 = scalar_select %p52, %s53, %s54
    %p58 = pneg %p52
    %p59 = scmp.eq.s32.totalorder %s8, 1
    %p60 = por %p58, %p59
    %p61 = scmp.ne.s32.totalorder %s53, %s56
    %p62 = scmp.eq.s32.totalorder %s8, 0
    %p63 = por %p61, %p62
    %p64 = scmp.ne.s32.totalorder %s53, %s56
    %p65 = scmp.eq.s32.totalorder %s13, 1
    %p66 = por %p64, %p65
    %p67 = scmp.ne.s32.totalorder %s56, %s57
    %p68 = scmp.eq.s32.totalorder %s13, 0
    %p69 = por %p67, %p68
    %p70 = scmp.ne.s32.totalorder %s56, %s57
    %p71 = scmp.eq.s32.totalorder %s14, 1
    %p72 = por %p70, %p71
    %p74 = scmp.ne.s32.totalorder %s57, %s73
    %p75 = scmp.eq.s32.totalorder %s14, 0
    %p76 = por %p74, %p75
    %s77 = ssub.s32 %s15, %s27
    %s78 = ssub.s32 %s16, %s23
    %s79 = sor.u32 %s77, %s78
    %p80 = scmp.eq.s32.totalorder %s79, 0
    %s82 = sadd.s32 %s81, 1
    %s83 = scalar_select %p80, %s81, %s82
    %p86 = pneg %p80
    %p87 = scmp.eq.s32.totalorder %s8, 1
    %p88 = por %p86, %p87
    %p89 = scmp.ne.s32.totalorder %s81, %s84
    %p90 = scmp.eq.s32.totalorder %s8, 0
    %p91 = por %p89, %p90
    %p92 = scmp.ne.s32.totalorder %s81, %s84
    %p93 = scmp.eq.s32.totalorder %s13, 1
    %p94 = por %p92, %p93
    %p95 = scmp.ne.s32.totalorder %s84, %s85
    %p96 = scmp.eq.s32.totalorder %s13, 0
    %p97 = por %p95, %p96
    %p98 = scmp.ne.s32.totalorder %s84, %s85
    %p99 = scmp.eq.s32.totalorder %s14, 1
    %p100 = por %p98, %p99
    %p102 = scmp.ne.s32.totalorder %s85, %s101
    %p103 = scmp.eq.s32.totalorder %s14, 0
    %p104 = por %p102, %p103
    %p105 = scmp.le.s32.totalorder 1, %s8
    %p106 = scmp.lt.s32.totalorder %s8, 3
    %p107 = pnand %p105, %p106
    %p108 = pneg %p107
    // Predicated region
    $region9: #{spp_block.1} parent=5 // pred_check
      _
    $region10: #{spp_block.1} parent=5 // pred_check_branch
      %110 = sbr.rel (%p107) target = $region12
    $region11: #{spp_block.1} parent=5 // pred_region
      %s111 = ssub.s32 %s8, 1
      // Predicated region
      $region13: #{spp_block.1} parent=11 // pred_check
        %p112 = pneg %p41
      $region14: #{spp_block.1} parent=11 // pred_check_branch
        %114 = sbr.rel (%p112) target = $region16
      $region15: #{spp_block.1} parent=11 // pred_region
        _
      $region16: #{spp_block.1} parent=11 // pred_fallthru
        _
    $region12: #{spp_block.1} parent=5 // pred_fallthru
      _
    %p115 = scmp.lt.s32.totalorder %s8, 2
    // Predicated region
    $region17: #{spp_block.1} parent=5 // pred_check
      %p116 = pneg %p115
    $region18: #{spp_block.1} parent=5 // pred_check_branch
      %118 = sbr.rel (%p116) target = $region20
    $region19: #{spp_block.1} parent=5 // pred_region
      // Predicated region
      $region21: #{spp_block.1} parent=19 // pred_check
        %p119 = pneg %p63
      $region22: #{spp_block.1} parent=19 // pred_check_branch
        %121 = sbr.rel (%p119) target = $region24
      $region23: #{spp_block.1} parent=19 // pred_region
        %p122 = scmp.lt.s32.totalorder %s15, 1
        %s123 = scalar_select %p122, %s15, 1
        %p124 = scmp.lt.s32.totalorder %s16, 0
        %s125 = scalar_select %p124, %s16, 0
        %s126 = smul.addr %s125, 2
        %s127 = smul.addr %s123, 2
        %s128 = sadd.s32 %s126, %s127
        %s129 = smul.addr %s128, 4
        %s130 = scalar_lea.vmem %s1, %s129
      $region24: #{spp_block.1} parent=19 // pred_fallthru
        _
    $region20: #{spp_block.1} parent=5 // pred_fallthru
      _
    %p131 = scmp.le.s32.totalorder 1, %s8
    %p132 = scmp.lt.s32.totalorder %s8, 3
    %p133 = pnand %p131, %p132
    %p134 = pneg %p133
    // Predicated region
    $region25: #{spp_block.1} parent=5 // pred_check
      _
    $region26: #{spp_block.1} parent=5 // pred_check_branch
      %136 = sbr.rel (%p133) target = $region28
    $region27: #{spp_block.1} parent=5 // pred_region
      %s137 = ssub.s32 %s8, 1
      %p138 = pneg %p41
      %p139 = pneg %p38
      %p140 = scmp.lt.s32.totalorder %s17, 1
      %s141 = scalar_select %p140, %s17, 1
      %p142 = scmp.lt.s32.totalorder %s18, 0
      %s143 = scalar_select %p142, %s18, 0
      %s144 = smul.addr %s143, 2
      %s145 = smul.addr %s141, 2
      %s146 = sadd.s32 %s144, %s145
      %s147 = smul.addr %s146, 4
      %s148 = scalar_lea.vmem %s1, %s147
      %p149 = pneg %p69
      %p150 = pneg %p66
      %p151 = pneg %p97
      %p152 = pneg %p94
      %p153 = scmp.lt.s32.totalorder %s17, 1
      %s154 = scalar_select %p153, %s17, 1
      %p155 = scmp.lt.s32.totalorder %s18, 0
      %s156 = scalar_select %p155, %s18, 0
      %s157 = smul.addr %s156, 2
      %s158 = smul.addr %s154, 8
      %s159 = sadd.s32 %s157, %s158
      %s160 = smul.addr %s159, 4
      %s161 = scalar_lea.vmem %s2, %s160
      %p162 = scmp.lt.s32.totalorder %s17, 1
      %s163 = scalar_select %p162, %s17, 1
      %p164 = scmp.lt.s32.totalorder %s18, 0
      %s165 = scalar_select %p164, %s18, 0
      %s166 = smul.addr %s165, 2
      %s167 = smul.addr %s163, 2
      %s168 = sadd.s32 %s166, %s167
      %s169 = smul.addr %s168, 4
      %s170 = scalar_lea.vmem %s1, %s169
      %p171 = scmp.lt.s32.totalorder %s17, 1
      %s172 = scalar_select %p171, %s17, 1
      %p173 = scmp.lt.s32.totalorder %s18, 0
      %s174 = scalar_select %p173, %s18, 0
      %s175 = smul.addr %s174, 2
      %s176 = smul.addr %s172, 8
      %s177 = sadd.s32 %s175, %s176
      %s178 = smul.addr %s177, 4
      %s179 = scalar_lea.vmem %s2, %s178
      %v180 = vld [vmem:[%s170] sm:$0xff]
      %v181 = vld [vmem:[%s0] sm:$0xff]
      %v183 = vcombine.high %v180, %v180
      %185 = vrot.lane.b32.xlu0 %v180, 127
      %v186 = vpop.permute.xlu0 %185
      %187 = vrot.lane.b32.xlu0 %v183, 127
      %v188 = vpop.permute.xlu0 %187
      %v189 = vlaneseq
      %v190 = vand.u32 %v189, 127
      %vm191 = vcmp.lt.s32.totalorder %v190, 127
      %v192 = vsel %vm191, %v186, %v188
      %v193 = vsel %vm191, %v188, %v186
      %v195 = vlaneseq
      %v196 = vshrl.u32 %v195, 7
      %v197 = vsub.s32 0, %v196
      %v198 = vrot.slane %v181, %v197
      %v199 = vlaneseq
      %v200 = vshrl.u32 %v199, 7
      %v201 = vsub.s32 4, %v200
      %v202 = vrot.slane %v181, %v201
      %v205 = vlaneseq
      %v206 = vshrl.u32 %v205, 7
      %v207 = vsub.s32 0, %v206
      %v208 = vrot.slane %v198, %v207
      %v209 = vlaneseq
      %v210 = vshrl.u32 %v209, 7
      %v211 = vsub.s32 0, %v210
      %v212 = vrot.slane %v202, %v211
      %v213 = vmin.f32 %v192, %v208
      %v214 = vmin.f32 %v193, %v212
      %215 = vrot.lane.b32.xlu0 %v180, 1
      %v216 = vpop.permute.xlu0 %215
      %217 = vrot.lane.b32.xlu0 %v183, 1
      %v218 = vpop.permute.xlu0 %217
      %vm219 = vcmp.lt.s32.totalorder %v190, 1
      %v220 = vsel %vm219, %v216, %v218
      %v221 = vsel %vm219, %v218, %v216
      %v222 = vlaneseq
      %v223 = vshrl.u32 %v222, 7
      %v224 = vsub.s32 1, %v223
      %v225 = vrot.slane %v181, %v224
      %v226 = vlaneseq
      %v227 = vshrl.u32 %v226, 7
      %v228 = vsub.s32 5, %v227
      %v229 = vrot.slane %v181, %v228
      %v232 = vlaneseq
      %v233 = vshrl.u32 %v232, 7
      %v234 = vsub.s32 1, %v233
      %v235 = vrot.slane %v225, %v234
      %v236 = vlaneseq
      %v237 = vshrl.u32 %v236, 7
      %v238 = vsub.s32 1, %v237
      %v239 = vrot.slane %v229, %v238
      %v240 = vmin.f32 %v221, %v235
      %v241 = vmin.f32 %v220, %v239
      %v242 = vmax.f32 %v213, %v240
      %v243 = vmax.f32 %v214, %v241
      %v246 = vcombine.low %v242, %v243
      %v248 = vmax.f32 %v180, %v246
      %v250 = vcombine.high %v248, %v248
      %252 = vrot.lane.b32.xlu0 %v248, 127
      %v253 = vpop.permute.xlu0 %252
      %254 = vrot.lane.b32.xlu0 %v250, 127
      %v255 = vpop.permute.xlu0 %254
      %v256 = vsel %vm191, %v253, %v255
      %v257 = vsel %vm191, %v255, %v253
      %v258 = vmin.f32 %v256, %v208
      %v259 = vmin.f32 %v257, %v212
      %260 = vrot.lane.b32.xlu0 %v248, 1
      %v261 = vpop.permute.xlu0 %260
      %262 = vrot.lane.b32.xlu0 %v250, 1
      %v263 = vpop.permute.xlu0 %262
      %v264 = vsel %vm219, %v261, %v263
      %v265 = vsel %vm219, %v263, %v261
      %v266 = vmin.f32 %v265, %v235
      %v267 = vmin.f32 %v264, %v239
      %v268 = vmax.f32 %v258, %v266
      %v269 = vmax.f32 %v259, %v267
      %270 = vrot.lane.b32.xlu0 %v268, 112
      %v271 = vpop.permute.xlu0 %270
      %272 = vrot.lane.b32.xlu0 %v269, 112
      %v273 = vpop.permute.xlu0 %272
      %vm274 = vcmp.lt.s32.totalorder %v190, 112
      %v275 = vsel %vm274, %v271, %v273
      %v276 = vsel %vm274, %v273, %v271
      %v277 = vlaneseq
      %v278 = vshrl.u32 %v277, 7
      %v279 = vsub.s32 2, %v278
      %v280 = vrot.slane %v181, %v279
      %v281 = vlaneseq
      %v282 = vshrl.u32 %v281, 7
      %v283 = vsub.s32 6, %v282
      %v284 = vrot.slane %v181, %v283
      %v287 = vlaneseq
      %v288 = vshrl.u32 %v287, 7
      %v289 = vsub.s32 2, %v288
      %v290 = vrot.slane %v280, %v289
      %v291 = vlaneseq
      %v292 = vshrl.u32 %v291, 7
      %v293 = vsub.s32 2, %v292
      %v294 = vrot.slane %v284, %v293
      %v295 = vmin.f32 %v275, %v290
      %v296 = vmin.f32 %v276, %v294
      %297 = vrot.lane.b32.xlu0 %v268, 16
      %v298 = vpop.permute.xlu0 %297
      %299 = vrot.lane.b32.xlu0 %v269, 16
      %v300 = vpop.permute.xlu0 %299
      %vm301 = vcmp.lt.s32.totalorder %v190, 16
      %v302 = vsel %vm301, %v298, %v300
      %v303 = vsel %vm301, %v300, %v298
      %v304 = vlaneseq
      %v305 = vshrl.u32 %v304, 7
      %v306 = vsub.s32 3, %v305
      %v307 = vrot.slane %v181, %v306
      %v308 = vlaneseq
      %v309 = vshrl.u32 %v308, 7
      %v310 = vsub.s32 7, %v309
      %v311 = vrot.slane %v181, %v310
      %v314 = vlaneseq
      %v315 = vshrl.u32 %v314, 7
      %v316 = vsub.s32 3, %v315
      %v317 = vrot.slane %v307, %v316
      %v318 = vlaneseq
      %v319 = vshrl.u32 %v318, 7
      %v320 = vsub.s32 3, %v319
      %v321 = vrot.slane %v311, %v320
      %v322 = vmin.f32 %v303, %v317
      %v323 = vmin.f32 %v302, %v321
      %v324 = vmax.f32 %v295, %v322
      %v325 = vmax.f32 %v296, %v323
      %v326 = vmax.f32 %v268, %v324
      %v327 = vmax.f32 %v269, %v325
      %328 = vrot.lane.b32.xlu0 %v326, 112
      %v329 = vpop.permute.xlu0 %328
      %330 = vrot.lane.b32.xlu0 %v327, 112
      %v331 = vpop.permute.xlu0 %330
      %v332 = vsel %vm274, %v329, %v331
      %v333 = vsel %vm274, %v331, %v329
      %v334 = vmin.f32 %v332, %v290
      %v335 = vmin.f32 %v333, %v294
      %336 = vrot.lane.b32.xlu0 %v326, 16
      %v337 = vpop.permute.xlu0 %336
      %338 = vrot.lane.b32.xlu0 %v327, 16
      %v339 = vpop.permute.xlu0 %338
      %v340 = vsel %vm301, %v337, %v339
      %v341 = vsel %vm301, %v339, %v337
      %v342 = vmin.f32 %v341, %v317
      %v343 = vmin.f32 %v340, %v321
      %v344 = vmax.f32 %v334, %v342
      %v345 = vmax.f32 %v335, %v343
      %346 = vrot.lane.b32.xlu0 %v344, 127
      %v347 = vpop.permute.xlu0 %346
      %348 = vrot.lane.b32.xlu0 %v345, 127
      %v349 = vpop.permute.xlu0 %348
      %v350 = vsel %vm191, %v347, %v349
      %v351 = vsel %vm191, %v349, %v347
      %v352 = vmin.f32 %v350, %v208
      %v353 = vmin.f32 %v351, %v212
      %354 = vrot.lane.b32.xlu0 %v344, 1
      %v355 = vpop.permute.xlu0 %354
      %356 = vrot.lane.b32.xlu0 %v345, 1
      %v357 = vpop.permute.xlu0 %356
      %v358 = vsel %vm219, %v355, %v357
      %v359 = vsel %vm219, %v357, %v355
      %v360 = vmin.f32 %v359, %v235
      %v361 = vmin.f32 %v358, %v239
      %v362 = vmax.f32 %v352, %v360
      %v363 = vmax.f32 %v353, %v361
      %v364 = vmax.f32 %v344, %v362
      %v365 = vmax.f32 %v345, %v363
      %366 = vrot.lane.b32.xlu0 %v364, 127
      %v367 = vpop.permute.xlu0 %366
      %368 = vrot.lane.b32.xlu0 %v365, 127
      %v369 = vpop.permute.xlu0 %368
      %v370 = vsel %vm191, %v367, %v369
      %v371 = vsel %vm191, %v369, %v367
      %v372 = vmin.f32 %v370, %v208
      %v373 = vmin.f32 %v371, %v212
      %374 = vrot.lane.b32.xlu0 %v364, 1
      %v375 = vpop.permute.xlu0 %374
      %376 = vrot.lane.b32.xlu0 %v365, 1
      %v377 = vpop.permute.xlu0 %376
      %v378 = vsel %vm219, %v375, %v377
      %v379 = vsel %vm219, %v377, %v375
      %v380 = vmin.f32 %v379, %v235
      %v381 = vmin.f32 %v378, %v239
      %v382 = vmax.f32 %v372, %v380
      %v383 = vmax.f32 %v373, %v381
      %384 = vrot.lane.b32.xlu0 %v382, 112
      %v385 = vpop.permute.xlu0 %384
      %386 = vrot.lane.b32.xlu0 %v383, 112
      %v387 = vpop.permute.xlu0 %386
      %v388 = vsel %vm274, %v385, %v387
      %v389 = vsel %vm274, %v387, %v385
      %v390 = vmin.f32 %v388, %v290
      %v391 = vmin.f32 %v389, %v294
      %392 = vrot.lane.b32.xlu0 %v382, 16
      %v393 = vpop.permute.xlu0 %392
      %394 = vrot.lane.b32.xlu0 %v383, 16
      %v395 = vpop.permute.xlu0 %394
      %v396 = vsel %vm301, %v393, %v395
      %v397 = vsel %vm301, %v395, %v393
      %v398 = vmin.f32 %v397, %v317
      %v399 = vmin.f32 %v396, %v321
      %v400 = vmax.f32 %v390, %v398
      %v401 = vmax.f32 %v391, %v399
      %v402 = vmax.f32 %v382, %v400
      %v403 = vmax.f32 %v383, %v401
      %404 = vrot.lane.b32.xlu0 %v402, 112
      %v405 = vpop.permute.xlu0 %404
      %406 = vrot.lane.b32.xlu0 %v403, 112
      %v407 = vpop.permute.xlu0 %406
      %v408 = vsel %vm274, %v405, %v407
      %v409 = vsel %vm274, %v407, %v405
      %v410 = vmin.f32 %v408, %v290
      %v411 = vmin.f32 %v409, %v294
      %412 = vrot.lane.b32.xlu0 %v402, 16
      %v413 = vpop.permute.xlu0 %412
      %414 = vrot.lane.b32.xlu0 %v403, 16
      %v415 = vpop.permute.xlu0 %414
      %v416 = vsel %vm301, %v413, %v415
      %v417 = vsel %vm301, %v415, %v413
      %v418 = vmin.f32 %v417, %v317
      %v419 = vmin.f32 %v416, %v321
      %v420 = vmax.f32 %v410, %v418
      %v421 = vmax.f32 %v411, %v419
      %422 = vrot.lane.b32.xlu0 %v420, 127
      %v423 = vpop.permute.xlu0 %422
      %424 = vrot.lane.b32.xlu0 %v421, 127
      %v425 = vpop.permute.xlu0 %424
      %v426 = vsel %vm191, %v423, %v425
      %v427 = vsel %vm191, %v425, %v423
      %v428 = vmin.f32 %v426, %v208
      %v429 = vmin.f32 %v427, %v212
      %430 = vrot.lane.b32.xlu0 %v420, 1
      %v431 = vpop.permute.xlu0 %430
      %432 = vrot.lane.b32.xlu0 %v421, 1
      %v433 = vpop.permute.xlu0 %432
      %v434 = vsel %vm219, %v431, %v433
      %v435 = vsel %vm219, %v433, %v431
      %v436 = vmin.f32 %v435, %v235
      %v437 = vmin.f32 %v434, %v239
      %v438 = vmax.f32 %v428, %v436
      %v439 = vmax.f32 %v429, %v437
      %v440 = vmax.f32 %v420, %v438
      %v441 = vmax.f32 %v421, %v439
      %442 = vrot.lane.b32.xlu0 %v440, 127
      %v443 = vpop.permute.xlu0 %442
      %444 = vrot.lane.b32.xlu0 %v441, 127
      %v445 = vpop.permute.xlu0 %444
      %v446 = vsel %vm191, %v443, %v445
      %v447 = vsel %vm191, %v445, %v443
      %v448 = vmin.f32 %v446, %v208
      %v449 = vmin.f32 %v447, %v212
      %450 = vrot.lane.b32.xlu0 %v440, 1
      %v451 = vpop.permute.xlu0 %450
      %452 = vrot.lane.b32.xlu0 %v441, 1
      %v453 = vpop.permute.xlu0 %452
      %v454 = vsel %vm219, %v451, %v453
      %v455 = vsel %vm219, %v453, %v451
      %v456 = vmin.f32 %v455, %v235
      %v457 = vmin.f32 %v454, %v239
      %v458 = vmax.f32 %v448, %v456
      %v459 = vmax.f32 %v449, %v457
      %460 = vrot.lane.b32.xlu0 %v458, 112
      %v461 = vpop.permute.xlu0 %460
      %462 = vrot.lane.b32.xlu0 %v459, 112
      %v463 = vpop.permute.xlu0 %462
      %v464 = vsel %vm274, %v461, %v463
      %v465 = vsel %vm274, %v463, %v461
      %v466 = vmin.f32 %v464, %v290
      %v467 = vmin.f32 %v465, %v294
      %468 = vrot.lane.b32.xlu0 %v458, 16
      %v469 = vpop.permute.xlu0 %468
      %470 = vrot.lane.b32.xlu0 %v459, 16
      %v471 = vpop.permute.xlu0 %470
      %v472 = vsel %vm301, %v469, %v471
      %v473 = vsel %vm301, %v471, %v469
      %v474 = vmin.f32 %v473, %v317
      %v475 = vmin.f32 %v472, %v321
      %v476 = vmax.f32 %v466, %v474
      %v477 = vmax.f32 %v467, %v475
      %v478 = vmax.f32 %v458, %v476
      %v479 = vmax.f32 %v459, %v477
      %480 = vrot.lane.b32.xlu0 %v478, 112
      %v481 = vpop.permute.xlu0 %480
      %482 = vrot.lane.b32.xlu0 %v479, 112
      %v483 = vpop.permute.xlu0 %482
      %v484 = vsel %vm274, %v481, %v483
      %v485 = vsel %vm274, %v483, %v481
      %v486 = vmin.f32 %v484, %v290
      %v487 = vmin.f32 %v485, %v294
      %488 = vrot.lane.b32.xlu0 %v478, 16
      %v489 = vpop.permute.xlu0 %488
      %490 = vrot.lane.b32.xlu0 %v479, 16
      %v491 = vpop.permute.xlu0 %490
      %v492 = vsel %vm301, %v489, %v491
      %v493 = vsel %vm301, %v491, %v489
      %v494 = vmin.f32 %v493, %v317
      %v495 = vmin.f32 %v492, %v321
      %v496 = vmax.f32 %v486, %v494
      %v497 = vmax.f32 %v487, %v495
      %498 = vst [vmem:[%s179] sm:$0xff] %v180
      %v501 = vcombine.low %v344, %v345
      %s503 = scalar_lea.vmem %s179, 8
      %504 = vst [vmem:[%s503] sm:$0xff] %v501
      %v507 = vcombine.low %v420, %v421
      %s509 = scalar_lea.vmem %s179, 16
      %510 = vst [vmem:[%s509] sm:$0xff] %v507
      %v513 = vcombine.low %v496, %v497
      %s515 = scalar_lea.vmem %s179, 24
      %516 = vst [vmem:[%s515] sm:$0xff] %v513
      %p517 = scmp.lt.s32.totalorder %s17, 1
      %s518 = scalar_select %p517, %s17, 1
      %p519 = scmp.lt.s32.totalorder %s18, 0
      %s520 = scalar_select %p519, %s18, 0
      %s521 = smul.addr %s520, 2
      %s522 = smul.addr %s518, 8
      %s523 = sadd.s32 %s521, %s522
      %s524 = smul.addr %s523, 4
      %s525 = scalar_lea.vmem %s2, %s524
      // Predicated region
      $region29: #{spp_block.1} parent=27 // pred_check
        %p526 = pneg %p94
      $region30: #{spp_block.1} parent=27 // pred_check_branch
        %528 = sbr.rel (%p526) target = $region32
      $region31: #{spp_block.1} parent=27 // pred_region
        _
      $region32: #{spp_block.1} parent=27 // pred_fallthru
        _
    $region28: #{spp_block.1} parent=5 // pred_fallthru
      _
    %p529 = scmp.le.s32.totalorder 2, %s8
    // Predicated region
    $region33: #{spp_block.1} parent=5 // pred_check
      %p530 = pneg %p529
    $region34: #{spp_block.1} parent=5 // pred_check_branch
      %532 = sbr.rel (%p530) target = $region36
    $region35: #{spp_block.1} parent=5 // pred_region
      %s533 = ssub.s32 %s8, 2
      // Predicated region
      $region37: #{spp_block.1} parent=35 // pred_check
        %p534 = pneg %p100
      $region38: #{spp_block.1} parent=35 // pred_check_branch
        %536 = sbr.rel (%p534) target = $region40
      $region39: #{spp_block.1} parent=35 // pred_region
        %p537 = scmp.lt.s32.totalorder %s19, 1
        %s538 = scalar_select %p537, %s19, 1
        %p539 = scmp.lt.s32.totalorder %s20, 0
        %s540 = scalar_select %p539, %s20, 0
        %s541 = smul.addr %s540, 2
        %s542 = smul.addr %s538, 8
        %s543 = sadd.s32 %s541, %s542
        %s544 = smul.addr %s543, 4
        %s545 = scalar_lea.vmem %s2, %s544
      $region40: #{spp_block.1} parent=35 // pred_fallthru
        _
    $region36: #{spp_block.1} parent=5 // pred_fallthru
      _
  $region6: #{spp_block.1} parent=0 // loop_footer
    %s12 = sadd.s32 1, %s8
  $region7: #{spp_block.1} parent=0 // loop_footer_branch
    %7 = sbr.rel target = $region3
  $region8: #{spp_block.1} parent=0 // loop_exit
    _

</llo_original>
